<compile_context>
chip_gen: v5e
topology: v5e:2x2
jax: 0.10.0
libtpu: 0.0.40
codegen_flags: <defaults>
</compile_context>

<pallas_src>
import math
import numpy as np
import jax
import jax.numpy as jnp
from jax.experimental import pallas as pl
from jax.experimental.pallas import tpu as pltpu


# --------------------------------------------------------------------------
# Kernel
# --------------------------------------------------------------------------
def _cutout_kernel(x_ref, ph_ref, pwt_ref, o_ref):
    """One (image-chunk, cutout-block) grid step.

    x_ref:   (G*H, W)       bf16  G images of this chunk, rows ordered (g, h)
    ph_ref:  (KC, cs, H)    bf16  row-pooling matrices of this cutout block
    pwt_ref: (1, W, KC*cs)  bf16  col-pooling matrices, pre-transposed and
                                  lane-concatenated on the host
    o_ref:   (KC, cs, G*cs)       lane-dense output slab
    """
    KC, cs, g_cs = o_ref.shape
    G = g_cs // cs
    H = ph_ref.shape[2]

    # Step 1: pool along W for all KC cutouts at once.
    # Single matmul, M = G*H (big), N = KC*cs (lane-dense), f32 accumulation.
    t = jnp.dot(x_ref[...], pwt_ref[0], preferred_element_type=jnp.float32)
    # NOTE: intermediate rounded to bf16 for the MXU in step 2 (on top of the
    # bf16 x / pooling weights) — adequate for CLIP-guidance use, slightly
    # below full-f32 adaptive_avg_pool2d precision.
    t = t.astype(jnp.bfloat16)                                  # (G*H, KC*cs)

    # Step 2: pool along H — one lane-dense matmul per cutout of the block.
    # Relayout rows (g, h) -> columns (g, j) with static slices + lane concat
    # (XLU slot, off the MXU critical path), then (cs, H) @ (H, G*cs).
    for kc in range(KC):
        pieces = [t[g * H:(g + 1) * H, kc * cs:(kc + 1) * cs] for g in range(G)]
        rhs = pieces[0] if G == 1 else jnp.concatenate(pieces, axis=1)  # (H, G*cs)
        out = jnp.dot(ph_ref[kc], rhs, preferred_element_type=jnp.float32)
        o_ref[kc] = out.astype(o_ref.dtype)        # unmasked, lane-dense store


# --------------------------------------------------------------------------
# Host-side parameter construction (pure numpy, single device->host sync)
# --------------------------------------------------------------------------
def _pool_matrices(L, cut_size, sizes, offsets):
    """Stacked adaptive-avg-pool matrices, shape (cutn, cut_size, L).

    Row i of matrix k averages input columns
    [offset_k + floor(i*size_k/cs), offset_k + ceil((i+1)*size_k/cs)),
    matching F.adaptive_avg_pool2d bin edges applied to a crop.
    """
    i = np.arange(cut_size)
    starts = offsets[:, None] + (i[None, :] * sizes[:, None]) // cut_size
    ends = offsets[:, None] + (-((-(i[None, :] + 1) * sizes[:, None]) // cut_size))
    cols = np.arange(L)
    mask = (cols[None, None, :] >= starts[..., None]) & \
           (cols[None, None, :] < ends[..., None])
    w = 1.0 / (ends - starts).astype(np.float32)
    return (mask * w[..., None]).astype(np.float32)


def _cutout_params(shape, cut_size, cutn, cut_pow, key):
    """Sample crop sizes/offsets (one batched RNG call); return raw Ph / Pw."""
    B, C, sideY, sideX = shape
    max_size = min(sideX, sideY)
    min_size = min(sideX, sideY, cut_size)

    u = np.asarray(jax.random.uniform(key, (cutn, 3)))     # single sync
    sizes = (u[:, 0] ** cut_pow * (max_size - min_size) + min_size).astype(np.int64)
    offx = (u[:, 1] * (sideX - sizes + 1)).astype(np.int64)
    offy = (u[:, 2] * (sideY - sizes + 1)).astype(np.int64)

    ph = _pool_matrices(sideY, cut_size, sizes, offy)   # (cutn, cs, H)
    pw = _pool_matrices(sideX, cut_size, sizes, offx)   # (cutn, cs, W)
    return ph, pw


# --------------------------------------------------------------------------
# Tiling / VMEM budgeting
# --------------------------------------------------------------------------
def _cutouts_per_step(cutn, cs, lane_target=256):
    """Smallest divisor of cutn with KC*cs >= lane_target (full MXU lanes)."""
    need = max(1, min(cutn, -(-lane_target // cs)))
    for d in range(need, cutn + 1):
        if cutn % d == 0:
            return d
    return cutn


def _vmem_capacity_bytes():
    try:
        info = pltpu.get_tpu_info()
        cap = getattr(info, "vmem_capacity_bytes", None)
        if cap:
            return int(cap)
    except Exception:
        pass
    return 64 << 20   # conservative (v7x-sized) fallback


def _choose_chunk(n_imgs, H, W, KC, cs, out_itemsize, budget):
    """Pick G (images per grid step).  Returns (G, n_imgs_pad, n_chunks, vmem).

    When more than one chunk is needed, G is aligned so the (G*H, W) x block
    is sublane-aligned and the (..., G*cs) output block is a multiple of 128
    lanes, and n_imgs is padded (zero images) up to a multiple of G.
    """
    lane_a = 128 // math.gcd(cs, 128)           # -> (G*cs) % 128 == 0
    sub_a = 16 // math.gcd(H, 16)               # -> (G*H) % 16 == 0 (bf16 tiles)
    g_align = lane_a * sub_a // math.gcd(lane_a, sub_a)
    g_cap = max(g_align, 8, 512 // max(KC, 1))  # bound in-kernel unroll (G*KC slices)

    def resident(G):
        x_blk = 2 * G * H * W * 2                           # x chunk, double-buffered
        par_blk = 2 * (KC * cs * H + W * KC * cs) * 2       # ph + pwt blocks
        t_buf = G * H * KC * cs * (4 + 2)                   # f32 step-1 result + bf16 copy
        relay = 2 * G * cs * H * 2 + G * cs * cs * 4        # concat rhs + f32 step-2 result
        out_blk = 2 * KC * cs * G * cs * out_itemsize       # output block, double-buffered
        return x_blk + par_blk + t_buf + relay + out_blk

    # Whole batch in a single chunk when it fits (blocks == full dims, no
    # divisibility constraints, best x reuse).
    if n_imgs <= g_cap and resident(n_imgs) <= budget:
        return n_imgs, n_imgs, 1, resident(n_imgs)

    G = g_align
    while G + g_align <= g_cap and resident(G + g_align) <= budget:
        G += g_align
    n_pad = -(-n_imgs // G) * G
    return G, n_pad, n_pad // G, resident(G)


# --------------------------------------------------------------------------
# Wrapper
# --------------------------------------------------------------------------
def make_cutouts(x, cut_size, cutn, cut_pow=1.0, key=None):
    """Pallas implementation of MakeCutouts.forward.  x: (B, C, H, W)."""
    if key is None:
        key = jax.random.PRNGKey(0)
    B, C, sideY, sideX = x.shape
    cs = int(cut_size)
    n_imgs = B * C

    # --- host-built pooling matrices (one RNG sync, vectorized numpy) ------
    ph_np, pw_np = _cutout_params(x.shape, cs, cutn, cut_pow, key)

    KC = _cutouts_per_step(cutn, cs)
    n_kb = cutn // KC
    ph = jnp.asarray(ph_np, dtype=jnp.bfloat16)                     # (cutn, cs, H)
    pwt = jnp.asarray(                                              # (n_kb, W, KC*cs)
        pw_np.reshape(n_kb, KC, cs, sideX).transpose(0, 3, 1, 2)
             .reshape(n_kb, sideX, KC * cs),
        dtype=jnp.bfloat16)

    # --- chunking over images + VMEM budget (generation-aware) -------------
    cap = _vmem_capacity_bytes()
    budget = (3 * cap) // 4            # ~96 MiB on 128 MiB parts, ~48 MiB on v7x
    G, n_pad, n_chunks, resident = _choose_chunk(
        n_imgs, sideY, sideX, KC, cs, x.dtype.itemsize, budget)
    vmem_limit = int(min(cap - (2 << 20),
                         max(int(1.5 * resident) + (16 << 20), 32 << 20)))

    # --- input layout: contiguous (n_pad*H, W) bf16, zero-padded images ----
    x_imgs = x.reshape(n_imgs, sideY, sideX).astype(jnp.bfloat16)
    if n_pad > n_imgs:
        pad = jnp.zeros((n_pad - n_imgs, sideY, sideX), jnp.bfloat16)
        x_imgs = jnp.concatenate([x_imgs, pad], axis=0)
    x2 = x_imgs.reshape(n_pad * sideY, sideX)

    flops = 2 * cutn * n_pad * sideY * cs * (sideX + cs)
    bytes_accessed = int(x2.size * 2
                         + n_chunks * (ph.size + pwt.size) * 2
                         + cutn * n_pad * cs * cs * x.dtype.itemsize)

    out = pl.pallas_call(
        _cutout_kernel,
        out_shape=jax.ShapeDtypeStruct((cutn, cs, n_pad * cs), x.dtype),
        grid=(n_chunks, n_kb),
        in_specs=[
            # x chunk: indexed only by the chunk axis -> DMA'd once per chunk,
            # reused for every cutout block of the inner axis.
            pl.BlockSpec((G * sideY, sideX), lambda g, k: (g, 0)),
            pl.BlockSpec((KC, cs, sideY), lambda g, k: (k, 0, 0)),
            pl.BlockSpec((1, sideX, KC * cs), lambda g, k: (k, 0, 0)),
        ],
        # Lane-dense output slab: last dim G*cs is a multiple of 128 whenever
        # the array is chunked (guaranteed by _choose_chunk), else full-dim.
        out_specs=pl.BlockSpec((KC, cs, G * cs), lambda g, k: (k, 0, g)),
        compiler_params=pltpu.CompilerParams(
            dimension_semantics=("parallel", "parallel"),
            vmem_limit_bytes=vmem_limit),
        cost_estimate=pl.CostEstimate(
            flops=flops, transcendentals=0, bytes_accessed=bytes_accessed),
    )(x2, ph, pwt)

    # Layout fix-up in XLA: (cutn, cs, n_pad*cs) -> torch.cat ordering
    # (cutout-major, then batch, then channel).
    out = out[:, :, : n_imgs * cs]                     # drop padded images
    out = out.reshape(cutn, cs, B, C, cs).transpose(0, 2, 3, 1, 4)
    return out.reshape(cutn * B, C, cs, cs)


# --------------------------------------------------------------------------
if __name__ == "__main__":
    B, C, H, W = 2, 4, 16, 16
    cut_size, cutn, cut_pow = 8, 4, 1.0

    key = jax.random.PRNGKey(0)
    kx, kc = jax.random.split(key)
    x = jax.random.normal(kx, (B, C, H, W), dtype=jnp.float32)

    out = make_cutouts(x, cut_size, cutn, cut_pow, key=kc)
    out = jax.block_until_ready(out)

    assert out.shape == (cutn * B, C, cut_size, cut_size), out.shape
    assert out.dtype == x.dtype

    # Numerical check vs. a pure-JAX reference that follows the same
    # precision path (bf16 x / pooling weights, bf16 step-1 intermediate).
    ph_np, pw_np = _cutout_params(x.shape, cut_size, cutn, cut_pow, kc)
    ph32 = jnp.asarray(ph_np, jnp.bfloat16).astype(jnp.float32)   # (cutn, cs, H)
    pw32 = jnp.asarray(pw_np, jnp.bfloat16).astype(jnp.float32)   # (cutn, cs, W)
    x32 = x.astype(jnp.bfloat16).astype(jnp.float32).reshape(B * C, H, W)
    t_ref = jnp.einsum("ghw,kjw->kghj", x32, pw32)                # pool along W
    t_ref = t_ref.astype(jnp.bfloat16).astype(jnp.float32)
    ref = jnp.einsum("kih,kghj->kgij", ph32, t_ref)               # pool along H
    ref = ref.reshape(cutn, B, C, cut_size, cut_size).reshape(
        cutn * B, C, cut_size, cut_size)
    np.testing.assert_allclose(np.asarray(out), np.asarray(ref),
                               atol=3e-2, rtol=3e-2)

    print("KERNEL_OK")
</pallas_src>

<mosaic_0001>
module attributes {stable_mosaic.version = 11 : i64} {
  func.func @_cutout_kernel(%arg0: i32, %arg1: i32, %arg2: memref<128x16xbf16, #tpu.memory_space<vmem>>, %arg3: memref<4x8x16xbf16, #tpu.memory_space<vmem>>, %arg4: memref<1x16x32xbf16, #tpu.memory_space<vmem>>, %arg5: memref<4x8x64xf32, #tpu.memory_space<vmem>>) attributes {dimension_semantics = [#tpu.dimension_semantics<parallel>, #tpu.dimension_semantics<parallel>], iteration_bounds = array<i64: 1, 1>, scalar_prefetch = 0 : i64, scratch_operands = 0 : i64, tpu.core_type = #tpu.core_type<tc>, window_params = [{transform_indices = @transform_0, window_bounds = array<i64: 128, 16>}, {transform_indices = @transform_1, window_bounds = array<i64: 4, 8, 16>}, {transform_indices = @transform_2, window_bounds = array<i64: 1, 16, 32>}, {transform_indices = @transform_3, window_bounds = array<i64: 4, 8, 64>}]} {
    %c0 = arith.constant 0 : index
    %c0_0 = arith.constant 0 : index
    %0 = vector.load %arg2[%c0, %c0_0] : memref<128x16xbf16, #tpu.memory_space<vmem>>, vector<128x16xbf16>
    %c0_1 = arith.constant 0 : index
    %c0_2 = arith.constant 0 : index
    %c0_3 = arith.constant 0 : index
    %1 = vector.load %arg4[%c0_1, %c0_2, %c0_3] : memref<1x16x32xbf16, #tpu.memory_space<vmem>>, vector<1x16x32xbf16>
    %2 = vector.shape_cast %1 : vector<1x16x32xbf16> to vector<16x32xbf16>
    %cst = arith.constant dense<0.000000e+00> : vector<128x32xf32>
    %3 = tpu.matmul %0, %2, %cst {dimension_numbers = #tpu.dot_dimension_numbers<[1], [0], [0], [1], [0, 0, 1, 1], [], []>} : vector<128x16xbf16>, vector<16x32xbf16>, vector<128x32xf32> -> vector<128x32xf32>
    %4 = arith.truncf %3 : vector<128x32xf32> to vector<128x32xbf16>
    %5 = vector.extract_strided_slice %4 {offsets = [0, 0], sizes = [16, 8], strides = [1, 1]} : vector<128x32xbf16> to vector<16x8xbf16>
    %6 = vector.extract_strided_slice %4 {offsets = [16, 0], sizes = [16, 8], strides = [1, 1]} : vector<128x32xbf16> to vector<16x8xbf16>
    %7 = vector.extract_strided_slice %4 {offsets = [32, 0], sizes = [16, 8], strides = [1, 1]} : vector<128x32xbf16> to vector<16x8xbf16>
    %8 = vector.extract_strided_slice %4 {offsets = [48, 0], sizes = [16, 8], strides = [1, 1]} : vector<128x32xbf16> to vector<16x8xbf16>
    %9 = vector.extract_strided_slice %4 {offsets = [64, 0], sizes = [16, 8], strides = [1, 1]} : vector<128x32xbf16> to vector<16x8xbf16>
    %10 = vector.extract_strided_slice %4 {offsets = [80, 0], sizes = [16, 8], strides = [1, 1]} : vector<128x32xbf16> to vector<16x8xbf16>
    %11 = vector.extract_strided_slice %4 {offsets = [96, 0], sizes = [16, 8], strides = [1, 1]} : vector<128x32xbf16> to vector<16x8xbf16>
    %12 = vector.extract_strided_slice %4 {offsets = [112, 0], sizes = [16, 8], strides = [1, 1]} : vector<128x32xbf16> to vector<16x8xbf16>
    %13 = tpu.concatenate %5, %6, %7, %8, %9, %10, %11, %12 in 1 : vector<16x8xbf16>, vector<16x8xbf16>, vector<16x8xbf16>, vector<16x8xbf16>, vector<16x8xbf16>, vector<16x8xbf16>, vector<16x8xbf16>, vector<16x8xbf16> -> vector<16x64xbf16>
    %c0_4 = arith.constant 0 : index
    %c0_5 = arith.constant 0 : index
    %c0_6 = arith.constant 0 : index
    %14 = vector.load %arg3[%c0_4, %c0_5, %c0_6] : memref<4x8x16xbf16, #tpu.memory_space<vmem>>, vector<1x8x16xbf16>
    %15 = vector.shape_cast %14 : vector<1x8x16xbf16> to vector<8x16xbf16>
    %cst_7 = arith.constant dense<0.000000e+00> : vector<8x64xf32>
    %16 = tpu.matmul %15, %13, %cst_7 {dimension_numbers = #tpu.dot_dimension_numbers<[1], [0], [0], [1], [0, 0, 1, 1], [], []>} : vector<8x16xbf16>, vector<16x64xbf16>, vector<8x64xf32> -> vector<8x64xf32>
    %c0_8 = arith.constant 0 : index
    %c0_9 = arith.constant 0 : index
    %c0_10 = arith.constant 0 : index
    %17 = vector.load %arg5[%c0_8, %c0_9, %c0_10] : memref<4x8x64xf32, #tpu.memory_space<vmem>>, vector<1x8x64xf32>
    %18 = vector.shape_cast %17 : vector<1x8x64xf32> to vector<8x64xf32>
    %19 = vector.shape_cast %16 : vector<8x64xf32> to vector<1x8x64xf32>
    tpu.vector_store %arg5[%c0_8, %c0_9, %c0_10], %19 {strides = array<i32>} : memref<4x8x64xf32, #tpu.memory_space<vmem>>, vector<1x8x64xf32>,
    %20 = vector.extract_strided_slice %4 {offsets = [0, 8], sizes = [16, 8], strides = [1, 1]} : vector<128x32xbf16> to vector<16x8xbf16>
    %21 = vector.extract_strided_slice %4 {offsets = [16, 8], sizes = [16, 8], strides = [1, 1]} : vector<128x32xbf16> to vector<16x8xbf16>
    %22 = vector.extract_strided_slice %4 {offsets = [32, 8], sizes = [16, 8], strides = [1, 1]} : vector<128x32xbf16> to vector<16x8xbf16>
    %23 = vector.extract_strided_slice %4 {offsets = [48, 8], sizes = [16, 8], strides = [1, 1]} : vector<128x32xbf16> to vector<16x8xbf16>
    %24 = vector.extract_strided_slice %4 {offsets = [64, 8], sizes = [16, 8], strides = [1, 1]} : vector<128x32xbf16> to vector<16x8xbf16>
    %25 = vector.extract_strided_slice %4 {offsets = [80, 8], sizes = [16, 8], strides = [1, 1]} : vector<128x32xbf16> to vector<16x8xbf16>
    %26 = vector.extract_strided_slice %4 {offsets = [96, 8], sizes = [16, 8], strides = [1, 1]} : vector<128x32xbf16> to vector<16x8xbf16>
    %27 = vector.extract_strided_slice %4 {offsets = [112, 8], sizes = [16, 8], strides = [1, 1]} : vector<128x32xbf16> to vector<16x8xbf16>
    %28 = tpu.concatenate %20, %21, %22, %23, %24, %25, %26, %27 in 1 : vector<16x8xbf16>, vector<16x8xbf16>, vector<16x8xbf16>, vector<16x8xbf16>, vector<16x8xbf16>, vector<16x8xbf16>, vector<16x8xbf16>, vector<16x8xbf16> -> vector<16x64xbf16>
    %c1 = arith.constant 1 : index
    %c0_11 = arith.constant 0 : index
    %c0_12 = arith.constant 0 : index
    %29 = vector.load %arg3[%c1, %c0_11, %c0_12] : memref<4x8x16xbf16, #tpu.memory_space<vmem>>, vector<1x8x16xbf16>
    %30 = vector.shape_cast %29 : vector<1x8x16xbf16> to vector<8x16xbf16>
    %cst_13 = arith.constant dense<0.000000e+00> : vector<8x64xf32>
    %31 = tpu.matmul %30, %28, %cst_13 {dimension_numbers = #tpu.dot_dimension_numbers<[1], [0], [0], [1], [0, 0, 1, 1], [], []>} : vector<8x16xbf16>, vector<16x64xbf16>, vector<8x64xf32> -> vector<8x64xf32>
    %c1_14 = arith.constant 1 : index
    %c0_15 = arith.constant 0 : index
    %c0_16 = arith.constant 0 : index
    %32 = vector.load %arg5[%c1_14, %c0_15, %c0_16] : memref<4x8x64xf32, #tpu.memory_space<vmem>>, vector<1x8x64xf32>
    %33 = vector.shape_cast %32 : vector<1x8x64xf32> to vector<8x64xf32>
    %34 = vector.shape_cast %31 : vector<8x64xf32> to vector<1x8x64xf32>
    tpu.vector_store %arg5[%c1_14, %c0_15, %c0_16], %34 {strides = array<i32>} : memref<4x8x64xf32, #tpu.memory_space<vmem>>, vector<1x8x64xf32>,
    %35 = vector.extract_strided_slice %4 {offsets = [0, 16], sizes = [16, 8], strides = [1, 1]} : vector<128x32xbf16> to vector<16x8xbf16>
    %36 = vector.extract_strided_slice %4 {offsets = [16, 16], sizes = [16, 8], strides = [1, 1]} : vector<128x32xbf16> to vector<16x8xbf16>
    %37 = vector.extract_strided_slice %4 {offsets = [32, 16], sizes = [16, 8], strides = [1, 1]} : vector<128x32xbf16> to vector<16x8xbf16>
    %38 = vector.extract_strided_slice %4 {offsets = [48, 16], sizes = [16, 8], strides = [1, 1]} : vector<128x32xbf16> to vector<16x8xbf16>
    %39 = vector.extract_strided_slice %4 {offsets = [64, 16], sizes = [16, 8], strides = [1, 1]} : vector<128x32xbf16> to vector<16x8xbf16>
    %40 = vector.extract_strided_slice %4 {offsets = [80, 16], sizes = [16, 8], strides = [1, 1]} : vector<128x32xbf16> to vector<16x8xbf16>
    %41 = vector.extract_strided_slice %4 {offsets = [96, 16], sizes = [16, 8], strides = [1, 1]} : vector<128x32xbf16> to vector<16x8xbf16>
    %42 = vector.extract_strided_slice %4 {offsets = [112, 16], sizes = [16, 8], strides = [1, 1]} : vector<128x32xbf16> to vector<16x8xbf16>
    %43 = tpu.concatenate %35, %36, %37, %38, %39, %40, %41, %42 in 1 : vector<16x8xbf16>, vector<16x8xbf16>, vector<16x8xbf16>, vector<16x8xbf16>, vector<16x8xbf16>, vector<16x8xbf16>, vector<16x8xbf16>, vector<16x8xbf16> -> vector<16x64xbf16>
    %c2 = arith.constant 2 : index
    %c0_17 = arith.constant 0 : index
    %c0_18 = arith.constant 0 : index
    %44 = vector.load %arg3[%c2, %c0_17, %c0_18] : memref<4x8x16xbf16, #tpu.memory_space<vmem>>, vector<1x8x16xbf16>
    %45 = vector.shape_cast %44 : vector<1x8x16xbf16> to vector<8x16xbf16>
    %cst_19 = arith.constant dense<0.000000e+00> : vector<8x64xf32>
    %46 = tpu.matmul %45, %43, %cst_19 {dimension_numbers = #tpu.dot_dimension_numbers<[1], [0], [0], [1], [0, 0, 1, 1], [], []>} : vector<8x16xbf16>, vector<16x64xbf16>, vector<8x64xf32> -> vector<8x64xf32>
    %c2_20 = arith.constant 2 : index
    %c0_21 = arith.constant 0 : index
    %c0_22 = arith.constant 0 : index
    %47 = vector.load %arg5[%c2_20, %c0_21, %c0_22] : memref<4x8x64xf32, #tpu.memory_space<vmem>>, vector<1x8x64xf32>
    %48 = vector.shape_cast %47 : vector<1x8x64xf32> to vector<8x64xf32>
    %49 = vector.shape_cast %46 : vector<8x64xf32> to vector<1x8x64xf32>
    tpu.vector_store %arg5[%c2_20, %c0_21, %c0_22], %49 {strides = array<i32>} : memref<4x8x64xf32, #tpu.memory_space<vmem>>, vector<1x8x64xf32>,
    %50 = vector.extract_strided_slice %4 {offsets = [0, 24], sizes = [16, 8], strides = [1, 1]} : vector<128x32xbf16> to vector<16x8xbf16>
    %51 = vector.extract_strided_slice %4 {offsets = [16, 24], sizes = [16, 8], strides = [1, 1]} : vector<128x32xbf16> to vector<16x8xbf16>
    %52 = vector.extract_strided_slice %4 {offsets = [32, 24], sizes = [16, 8], strides = [1, 1]} : vector<128x32xbf16> to vector<16x8xbf16>
    %53 = vector.extract_strided_slice %4 {offsets = [48, 24], sizes = [16, 8], strides = [1, 1]} : vector<128x32xbf16> to vector<16x8xbf16>
    %54 = vector.extract_strided_slice %4 {offsets = [64, 24], sizes = [16, 8], strides = [1, 1]} : vector<128x32xbf16> to vector<16x8xbf16>
    %55 = vector.extract_strided_slice %4 {offsets = [80, 24], sizes = [16, 8], strides = [1, 1]} : vector<128x32xbf16> to vector<16x8xbf16>
    %56 = vector.extract_strided_slice %4 {offsets = [96, 24], sizes = [16, 8], strides = [1, 1]} : vector<128x32xbf16> to vector<16x8xbf16>
    %57 = vector.extract_strided_slice %4 {offsets = [112, 24], sizes = [16, 8], strides = [1, 1]} : vector<128x32xbf16> to vector<16x8xbf16>
    %58 = tpu.concatenate %50, %51, %52, %53, %54, %55, %56, %57 in 1 : vector<16x8xbf16>, vector<16x8xbf16>, vector<16x8xbf16>, vector<16x8xbf16>, vector<16x8xbf16>, vector<16x8xbf16>, vector<16x8xbf16>, vector<16x8xbf16> -> vector<16x64xbf16>
    %c3 = arith.constant 3 : index
    %c0_23 = arith.constant 0 : index
    %c0_24 = arith.constant 0 : index
    %59 = vector.load %arg3[%c3, %c0_23, %c0_24] : memref<4x8x16xbf16, #tpu.memory_space<vmem>>, vector<1x8x16xbf16>
    %60 = vector.shape_cast %59 : vector<1x8x16xbf16> to vector<8x16xbf16>
    %cst_25 = arith.constant dense<0.000000e+00> : vector<8x64xf32>
    %61 = tpu.matmul %60, %58, %cst_25 {dimension_numbers = #tpu.dot_dimension_numbers<[1], [0], [0], [1], [0, 0, 1, 1], [], []>} : vector<8x16xbf16>, vector<16x64xbf16>, vector<8x64xf32> -> vector<8x64xf32>
    %c3_26 = arith.constant 3 : index
    %c0_27 = arith.constant 0 : index
    %c0_28 = arith.constant 0 : index
    %62 = vector.load %arg5[%c3_26, %c0_27, %c0_28] : memref<4x8x64xf32, #tpu.memory_space<vmem>>, vector<1x8x64xf32>
    %63 = vector.shape_cast %62 : vector<1x8x64xf32> to vector<8x64xf32>
    %64 = vector.shape_cast %61 : vector<8x64xf32> to vector<1x8x64xf32>
    tpu.vector_store %arg5[%c3_26, %c0_27, %c0_28], %64 {strides = array<i32>} : memref<4x8x64xf32, #tpu.memory_space<vmem>>, vector<1x8x64xf32>,
    return
  }
  func.func @transform_0(%arg0: i32, %arg1: i32) -> (i32, i32) {
    %c0_i32 = arith.constant 0 : i32
    %c0_i32_0 = arith.constant 0 : i32
    return %arg0, %c0_i32 : i32, i32
  }
  func.func @transform_1(%arg0: i32, %arg1: i32) -> (i32, i32, i32) {
    %c0_i32 = arith.constant 0 : i32
    %c0_i32_0 = arith.constant 0 : i32
    %c0_i32_1 = arith.constant 0 : i32
    return %arg1, %c0_i32, %c0_i32_0 : i32, i32, i32
  }
  func.func @transform_2(%arg0: i32, %arg1: i32) -> (i32, i32, i32) {
    %c0_i32 = arith.constant 0 : i32
    %c0_i32_0 = arith.constant 0 : i32
    %c0_i32_1 = arith.constant 0 : i32
    return %arg1, %c0_i32, %c0_i32_0 : i32, i32, i32
  }
  func.func @transform_3(%arg0: i32, %arg1: i32) -> (i32, i32, i32) {
    %c0_i32 = arith.constant 0 : i32
    %c0_i32_0 = arith.constant 0 : i32
    return %arg1, %c0_i32, %arg0 : i32, i32, i32
  }
}

</mosaic_0001>

<llo_original>
// kernel: tpu_custom_call.1
$region0: #{tpu_custom_call.1}
  #allocation0 [shape = 'u32[]', space=smem, size = 0x4, offset = 0x4, fixed_abs, tag = 'smem constant byte address 0x4 - core index']
  #allocation1 [shape = 'u32[72,128]{1,0:T(1,128)}', space=vmem, size = 0x9000, scoped, tag = 'internal scratch']
  %s0 = inlined_call_operand.vmem [shape: bf16[128,16], index: 0, kind: input, shape index: {}]
  %s1 = inlined_call_operand.vmem [shape: bf16[4,8,16], index: 1, kind: input, shape index: {}]
  %s2 = inlined_call_operand.vmem [shape: bf16[1,16,32], index: 2, kind: input, shape index: {}]
  %s3 = inlined_call_operand.hbm [shape: f32[4,8,64], index: 3, kind: output, shape index: {}]
  %s4 = sld [smem:[#allocation0]]
  $region22: #{tpu_custom_call.1} parent=0
    _
  %s6 = ssub.s32 1, %s4
  %s7 = scalar_select 0, %s6, %s4
  $region1: #{tpu_custom_call.1} parent=0
    #allocation2 [shape = 'u8[16384]{0}', space=vmem, size = 0x4000, scoped, tag = 'output window, operand 0, single buffered']
    #allocation3 [shape = 's32[1]{0}', space=sflag, size = 0x4, scoped, tag = 'scoped memory for tpu_custom_call.1']
    %8 = vsyncpa [#allocation3], 0
    // Predicated region
    $region2: #{tpu_custom_call.1} parent=1 // pred_check
      _
    $region3: #{tpu_custom_call.1} parent=1 // pred_check_branch
      %10 = sbr.rel (0) target = $region5
    $region4: #{tpu_custom_call.1} parent=1 // pred_region
      _
    $region5: #{tpu_custom_call.1} parent=1 // pred_fallthru
      _
    // Predicated region
    $region6: #{tpu_custom_call.1} parent=1 // pred_check
      _
    $region7: #{tpu_custom_call.1} parent=1 // pred_check_branch
      %12 = sbr.rel (0) target = $region9
    $region8: #{tpu_custom_call.1} parent=1 // pred_region
      _
    $region9: #{tpu_custom_call.1} parent=1 // pred_fallthru
      _
    // Predicated region
    $region10: #{tpu_custom_call.1} parent=1 // pred_check
      _
    $region11: #{tpu_custom_call.1} parent=1 // pred_check_branch
      %14 = sbr.rel (0) target = $region13
    $region12: #{tpu_custom_call.1} parent=1 // pred_region
      _
    $region13: #{tpu_custom_call.1} parent=1 // pred_fallthru
      _
    %v16 = vld [vmem:[%s0] sm:$0xf]
    %v17 = vld [vmem:[%s0 + $0x4] sm:$0xf]
    %v18 = vld [vmem:[%s0 + $0x8] sm:$0xf]
    %v19 = vld [vmem:[%s0 + $0xc] sm:$0xf]
    %v20 = vld [vmem:[%s0 + $0x10] sm:$0xf]
    %v21 = vld [vmem:[%s0 + $0x14] sm:$0xf]
    %v22 = vld [vmem:[%s0 + $0x18] sm:$0xf]
    %v23 = vld [vmem:[%s0 + $0x1c] sm:$0xf]
    %v24 = vld [vmem:[%s0 + $0x20] sm:$0xf]
    %v25 = vld [vmem:[%s0 + $0x24] sm:$0xf]
    %v26 = vld [vmem:[%s0 + $0x28] sm:$0xf]
    %v27 = vld [vmem:[%s0 + $0x2c] sm:$0xf]
    %v28 = vld [vmem:[%s0 + $0x30] sm:$0xf]
    %v29 = vld [vmem:[%s0 + $0x34] sm:$0xf]
    %v30 = vld [vmem:[%s0 + $0x38] sm:$0xf]
    %v31 = vld [vmem:[%s0 + $0x3c] sm:$0xf]
    %v32 = vld [vmem:[%s2] sm:$0xf]
    %v33 = vld [vmem:[%s2 + $0x4] sm:$0xf]
    %v50 = vunpack.c.l.b16 %v16
    %v51 = vunpack.c.l.b16 %v17
    %v52 = vunpack.c.l.b16 %v18
    %v53 = vunpack.c.l.b16 %v19
    %v54 = vunpack.c.l.b16 %v20
    %v55 = vunpack.c.l.b16 %v21
    %v56 = vunpack.c.l.b16 %v22
    %v57 = vunpack.c.l.b16 %v23
    %v58 = vunpack.c.l.b16 %v24
    %v59 = vunpack.c.l.b16 %v25
    %v60 = vunpack.c.l.b16 %v26
    %v61 = vunpack.c.l.b16 %v27
    %v62 = vunpack.c.l.b16 %v28
    %v63 = vunpack.c.l.b16 %v29
    %v64 = vunpack.c.l.b16 %v30
    %v65 = vunpack.c.l.b16 %v31
    %v66 = vpack.c.b16 %v51, %v50
    %v67 = vpack.c.b16 %v53, %v52
    %v68 = vpack.c.b16 %v55, %v54
    %v69 = vpack.c.b16 %v57, %v56
    %v70 = vpack.c.b16 %v59, %v58
    %v71 = vpack.c.b16 %v61, %v60
    %v72 = vpack.c.b16 %v63, %v62
    %v73 = vpack.c.b16 %v65, %v64
    %v76 = vunpack.c.l.b16 %v32
    %v77 = vunpack.c.l.b16 %v33
    %v78 = vpack.c.b16 %v77, %v76
    %vm80 = vcmask 130048
    %v82 = vsel %vm80, %v66, 0
    %v85 = vsel %vm80, %v67, 0
    %v88 = vsel %vm80, %v68, 0
    %v91 = vsel %vm80, %v69, 0
    %v94 = vsel %vm80, %v70, 0
    %v97 = vsel %vm80, %v71, 0
    %v100 = vsel %vm80, %v72, 0
    %v103 = vsel %vm80, %v73, 0
    %105 = vmatpush.bf16.msra.mxu0 0
    %106 = vmatpush.bf16.msra.mxu0 0
    %107 = vmatpush.bf16.msra.mxu0 0
    %108 = vmatpush.bf16.msra.mxu0 0
    %109 = vmatpush.bf16.msra.mxu0 0
    %110 = vmatpush.bf16.msra.mxu0 0
    %111 = vmatpush.bf16.msra.mxu0 0
    %112 = vmatpush.bf16.msra.mxu0 %v78
    %113 = vmatmul.bf16.gmra.mxu0 %v82
    %v114 = vpop.f32.mrf.mxu0
    %v115 = vadd.f32 0.0, %v114
    %v116 = vpop.f32.mrf.mxu0
    %v117 = vadd.f32 0.0, %v116
    %118 = vmatmul.bf16.gmra.mxu0 %v85
    %v119 = vpop.f32.mrf.mxu0
    %v120 = vadd.f32 0.0, %v119
    %v121 = vpop.f32.mrf.mxu0
    %v122 = vadd.f32 0.0, %v121
    %123 = vmatmul.bf16.gmra.mxu0 %v88
    %v124 = vpop.f32.mrf.mxu0
    %v125 = vadd.f32 0.0, %v124
    %v126 = vpop.f32.mrf.mxu0
    %v127 = vadd.f32 0.0, %v126
    %128 = vmatmul.bf16.gmra.mxu0 %v91
    %v129 = vpop.f32.mrf.mxu0
    %v130 = vadd.f32 0.0, %v129
    %v131 = vpop.f32.mrf.mxu0
    %v132 = vadd.f32 0.0, %v131
    %133 = vmatmul.bf16.gmra.mxu0 %v94
    %v134 = vpop.f32.mrf.mxu0
    %v135 = vadd.f32 0.0, %v134
    %v136 = vpop.f32.mrf.mxu0
    %v137 = vadd.f32 0.0, %v136
    %138 = vmatmul.bf16.gmra.mxu0 %v97
    %v139 = vpop.f32.mrf.mxu0
    %v140 = vadd.f32 0.0, %v139
    %v141 = vpop.f32.mrf.mxu0
    %v142 = vadd.f32 0.0, %v141
    %143 = vmatmul.bf16.gmra.mxu0 %v100
    %v144 = vpop.f32.mrf.mxu0
    %v145 = vadd.f32 0.0, %v144
    %v146 = vpop.f32.mrf.mxu0
    %v147 = vadd.f32 0.0, %v146
    %148 = vmatmul.bf16.gmra.mxu0 %v103
    %v149 = vpop.f32.mrf.mxu0
    %v150 = vadd.f32 0.0, %v149
    %v151 = vpop.f32.mrf.mxu0
    %v152 = vadd.f32 0.0, %v151
    %153 = vdwg.mxu0
    %v154 = vpack.c.bf16 %v115, %v115
    %v155 = vpack.c.bf16 %v117, %v117
    %v156 = vpack.c.bf16 %v120, %v120
    %v157 = vpack.c.bf16 %v122, %v122
    %v158 = vpack.c.bf16 %v125, %v125
    %v159 = vpack.c.bf16 %v127, %v127
    %v160 = vpack.c.bf16 %v130, %v130
    %v161 = vpack.c.bf16 %v132, %v132
    %v162 = vpack.c.bf16 %v135, %v135
    %v163 = vpack.c.bf16 %v137, %v137
    %v164 = vpack.c.bf16 %v140, %v140
    %v165 = vpack.c.bf16 %v142, %v142
    %v166 = vpack.c.bf16 %v145, %v145
    %v167 = vpack.c.bf16 %v147, %v147
    %v168 = vpack.c.bf16 %v150, %v150
    %v169 = vpack.c.bf16 %v152, %v152
    %v172 = vunpack.c.l.b16 %v154
    %v173 = vunpack.c.l.b16 %v155
    %v174 = vpack.c.b16 %v173, %v172
    %v177 = vunpack.c.l.b16 %v156
    %v178 = vunpack.c.l.b16 %v157
    %v179 = vpack.c.b16 %v178, %v177
    %180 = vrot.lane.b32.xlu0 %v179, 8
    %v181 = vpop.permute.xlu0 %180
    %v184 = vunpack.c.l.b16 %v158
    %v185 = vunpack.c.l.b16 %v159
    %v186 = vpack.c.b16 %v185, %v184
    %187 = vrot.lane.b32.xlu0 %v186, 16
    %v188 = vpop.permute.xlu0 %187
    %v191 = vunpack.c.l.b16 %v160
    %v192 = vunpack.c.l.b16 %v161
    %v193 = vpack.c.b16 %v192, %v191
    %194 = vrot.lane.b32.xlu0 %v193, 24
    %v195 = vpop.permute.xlu0 %194
    %v198 = vunpack.c.l.b16 %v162
    %v199 = vunpack.c.l.b16 %v163
    %v200 = vpack.c.b16 %v199, %v198
    %201 = vrot.lane.b32.xlu0 %v200, 32
    %v202 = vpop.permute.xlu0 %201
    %v205 = vunpack.c.l.b16 %v164
    %v206 = vunpack.c.l.b16 %v165
    %v207 = vpack.c.b16 %v206, %v205
    %208 = vrot.lane.b32.xlu0 %v207, 40
    %v209 = vpop.permute.xlu0 %208
    %v212 = vunpack.c.l.b16 %v166
    %v213 = vunpack.c.l.b16 %v167
    %v214 = vpack.c.b16 %v213, %v212
    %215 = vrot.lane.b32.xlu0 %v214, 48
    %v216 = vpop.permute.xlu0 %215
    %v219 = vunpack.c.l.b16 %v168
    %v220 = vunpack.c.l.b16 %v169
    %v221 = vpack.c.b16 %v220, %v219
    %222 = vrot.lane.b32.xlu0 %v221, 56
    %v223 = vpop.permute.xlu0 %222
    %vm224 = vcmask 64512
    %v227 = vsel %vm224, %v174, %v181
    %v229 = vsel %vm80, %v227, %v188
    %vm230 = vcmask 195584
    %v232 = vsel %vm230, %v229, %v195
    %vm233 = vcmask 261120
    %v235 = vsel %vm233, %v232, %v202
    %vm236 = vcmask 326656
    %v238 = vsel %vm236, %v235, %v209
    %vm239 = vcmask 392192
    %v241 = vsel %vm239, %v238, %v216
    %vm242 = vcmask 457728
    %v244 = vsel %vm242, %v241, %v223
    %v246 = vld [vmem:[%s1] sm:$0xf]
    %v248 = vsel %vm80, %v246, 0
    %250 = vmatpush.bf16.msra.mxu0 0
    %251 = vmatpush.bf16.msra.mxu0 0
    %252 = vmatpush.bf16.msra.mxu0 0
    %253 = vmatpush.bf16.msra.mxu0 0
    %254 = vmatpush.bf16.msra.mxu0 0
    %255 = vmatpush.bf16.msra.mxu0 0
    %256 = vmatpush.bf16.msra.mxu0 0
    %257 = vmatpush.bf16.msra.mxu0 %v244
    %258 = vmatmul.bf16.gmra.mxu0 %v248
    %v259 = vpop.f32.mrf.mxu0
    %v260 = vadd.f32 0.0, %v259
    %v261 = vpop.f32.mrf.mxu0
    %262 = vdwg.mxu0
    %vm263 = vcmask 523264
    %264 = vst.msk [vmem:[#allocation2] sm:$0xff] %vm263, %v260
    %265 = vrot.lane.b32.xlu0 %v174, 120
    %v266 = vpop.permute.xlu0 %265
    %267 = vrot.lane.b32.xlu0 %v186, 8
    %v268 = vpop.permute.xlu0 %267
    %269 = vrot.lane.b32.xlu0 %v193, 16
    %v270 = vpop.permute.xlu0 %269
    %271 = vrot.lane.b32.xlu0 %v200, 24
    %v272 = vpop.permute.xlu0 %271
    %273 = vrot.lane.b32.xlu0 %v207, 32
    %v274 = vpop.permute.xlu0 %273
    %275 = vrot.lane.b32.xlu0 %v214, 40
    %v276 = vpop.permute.xlu0 %275
    %277 = vrot.lane.b32.xlu0 %v221, 48
    %v278 = vpop.permute.xlu0 %277
    %v281 = vsel %vm224, %v266, %v179
    %v283 = vsel %vm80, %v281, %v268
    %v285 = vsel %vm230, %v283, %v270
    %v287 = vsel %vm233, %v285, %v272
    %v289 = vsel %vm236, %v287, %v274
    %v291 = vsel %vm239, %v289, %v276
    %v293 = vsel %vm242, %v291, %v278
    %s295 = scalar_lea.vmem %s1, 4
    %v296 = vld [vmem:[%s295] sm:$0xf]
    %v298 = vsel %vm80, %v296, 0
    %300 = vmatpush.bf16.msra.mxu0 0
    %301 = vmatpush.bf16.msra.mxu0 0
    %302 = vmatpush.bf16.msra.mxu0 0
    %303 = vmatpush.bf16.msra.mxu0 0
    %304 = vmatpush.bf16.msra.mxu0 0
    %305 = vmatpush.bf16.msra.mxu0 0
    %306 = vmatpush.bf16.msra.mxu0 0
    %307 = vmatpush.bf16.msra.mxu0 %v293
    %308 = vmatmul.bf16.gmra.mxu0 %v298
    %v309 = vpop.f32.mrf.mxu0
    %v310 = vadd.f32 0.0, %v309
    %v311 = vpop.f32.mrf.mxu0
    %312 = vdwg.mxu0
    %s313 = scalar_lea.vmem [#allocation2], 8
    %314 = vst.msk [vmem:[%s313] sm:$0xff] %vm263, %v310
    %315 = vrot.lane.b32.xlu0 %v174, 112
    %v316 = vpop.permute.xlu0 %315
    %317 = vrot.lane.b32.xlu0 %v179, 120
    %v318 = vpop.permute.xlu0 %317
    %319 = vrot.lane.b32.xlu0 %v193, 8
    %v320 = vpop.permute.xlu0 %319
    %321 = vrot.lane.b32.xlu0 %v200, 16
    %v322 = vpop.permute.xlu0 %321
    %323 = vrot.lane.b32.xlu0 %v207, 24
    %v324 = vpop.permute.xlu0 %323
    %325 = vrot.lane.b32.xlu0 %v214, 32
    %v326 = vpop.permute.xlu0 %325
    %327 = vrot.lane.b32.xlu0 %v221, 40
    %v328 = vpop.permute.xlu0 %327
    %v331 = vsel %vm224, %v316, %v318
    %v333 = vsel %vm80, %v331, %v186
    %v335 = vsel %vm230, %v333, %v320
    %v337 = vsel %vm233, %v335, %v322
    %v339 = vsel %vm236, %v337, %v324
    %v341 = vsel %vm239, %v339, %v326
    %v343 = vsel %vm242, %v341, %v328
    %s345 = scalar_lea.vmem %s1, 8
    %v346 = vld [vmem:[%s345] sm:$0xf]
    %v348 = vsel %vm80, %v346, 0
    %350 = vmatpush.bf16.msra.mxu0 0
    %351 = vmatpush.bf16.msra.mxu0 0
    %352 = vmatpush.bf16.msra.mxu0 0
    %353 = vmatpush.bf16.msra.mxu0 0
    %354 = vmatpush.bf16.msra.mxu0 0
    %355 = vmatpush.bf16.msra.mxu0 0
    %356 = vmatpush.bf16.msra.mxu0 0
    %357 = vmatpush.bf16.msra.mxu0 %v343
    %358 = vmatmul.bf16.gmra.mxu0 %v348
    %v359 = vpop.f32.mrf.mxu0
    %v360 = vadd.f32 0.0, %v359
    %v361 = vpop.f32.mrf.mxu0
    %362 = vdwg.mxu0
    %s363 = scalar_lea.vmem [#allocation2], 16
    %364 = vst.msk [vmem:[%s363] sm:$0xff] %vm263, %v360
    %365 = vrot.lane.b32.xlu0 %v174, 104
    %v366 = vpop.permute.xlu0 %365
    %367 = vrot.lane.b32.xlu0 %v179, 112
    %v368 = vpop.permute.xlu0 %367
    %369 = vrot.lane.b32.xlu0 %v186, 120
    %v370 = vpop.permute.xlu0 %369
    %371 = vrot.lane.b32.xlu0 %v200, 8
    %v372 = vpop.permute.xlu0 %371
    %373 = vrot.lane.b32.xlu0 %v207, 16
    %v374 = vpop.permute.xlu0 %373
    %375 = vrot.lane.b32.xlu0 %v214, 24
    %v376 = vpop.permute.xlu0 %375
    %377 = vrot.lane.b32.xlu0 %v221, 32
    %v378 = vpop.permute.xlu0 %377
    %v381 = vsel %vm224, %v366, %v368
    %v383 = vsel %vm80, %v381, %v370
    %v385 = vsel %vm230, %v383, %v193
    %v387 = vsel %vm233, %v385, %v372
    %v389 = vsel %vm236, %v387, %v374
    %v391 = vsel %vm239, %v389, %v376
    %v393 = vsel %vm242, %v391, %v378
    %s395 = scalar_lea.vmem %s1, 12
    %v396 = vld [vmem:[%s395] sm:$0xf]
    %v398 = vsel %vm80, %v396, 0
    %400 = vmatpush.bf16.msra.mxu0 0
    %401 = vmatpush.bf16.msra.mxu0 0
    %402 = vmatpush.bf16.msra.mxu0 0
    %403 = vmatpush.bf16.msra.mxu0 0
    %404 = vmatpush.bf16.msra.mxu0 0
    %405 = vmatpush.bf16.msra.mxu0 0
    %406 = vmatpush.bf16.msra.mxu0 0
    %407 = vmatpush.bf16.msra.mxu0 %v393
    %408 = vmatmul.bf16.gmra.mxu0 %v398
    %v409 = vpop.f32.mrf.mxu0
    %v410 = vadd.f32 0.0, %v409
    %v411 = vpop.f32.mrf.mxu0
    %412 = vdwg.mxu0
    %s413 = scalar_lea.vmem [#allocation2], 24
    %414 = vst.msk [vmem:[%s413] sm:$0xff] %vm263, %v410
    // Predicated region
    $region14: #{tpu_custom_call.1} parent=1 // pred_check
      _
    $region15: #{tpu_custom_call.1} parent=1 // pred_check_branch
      %416 = sbr.rel (0) target = $region17
    $region16: #{tpu_custom_call.1} parent=1 // pred_region
      %418 = vsyncadd [#allocation3], 0
      %s419 = sshll.u32 [#allocation2], 4
      %s420 = int_to_ptr.vmem [resolvable:$true] %s419
      %s421 = sshll.u32 %s3, 4
      %s422 = int_to_ptr.hbm [resolvable:$true] %s421
      %427 = dma.vmem_to_hbm [thread:$0]  %s420, 512, %s422, [#allocation3], 128, 128, 8
    $region17: #{tpu_custom_call.1} parent=1 // pred_fallthru
      _
    // Predicated region
    $region18: #{tpu_custom_call.1} parent=1 // pred_check
      _
    $region19: #{tpu_custom_call.1} parent=1 // pred_check_branch
      %429 = sbr.rel (0) target = $region21
    $region20: #{tpu_custom_call.1} parent=1 // pred_region
      %431 = dma.done [#allocation3], 512
    $region21: #{tpu_custom_call.1} parent=1 // pred_fallthru
      _
    %432 = vsyncpa [#allocation3], 1

</llo_original>
